<compile_context>
chip_gen: v7x
topology: tpu7x:2x2x1
jax: 0.10.0
libtpu: 0.0.40
codegen_flags: <defaults>
</compile_context>

<pallas_src>
import jax
import jax.numpy as jnp
from jax import lax
from jax.experimental import pallas as pl
from jax.experimental.pallas import tpu as pltpu

EPS = 1e-5


def _make_kernel(N, H, W, C):
    R, L = N * H, W * C                 # (32, 128) for the demo shapes
    inv_m = 1.0 / float(N * H * W)

    def kernel(x_ref, w13_ref, w2_ref, gb_ref, o_ref):
        x = x_ref[...]                                   # (R, L) f32 lane-dense slab
        gb = gb_ref[...]                                 # (8, L) f32 packed gamma/beta

        def bn(v, idx):
            """Training-mode BN on a lane-packed (R, L) slab; gamma/beta row pair idx."""
            g = gb[2 * idx:2 * idx + 1, :]
            b = gb[2 * idx + 1:2 * idx + 2, :]
            s = jnp.sum(v, axis=0, keepdims=True)        # (1, L) per-lane sums
            sq = jnp.sum(v * v, axis=0, keepdims=True)   # (1, L) per-lane sum of squares
            ssq = jnp.concatenate([s, sq], axis=0)       # (2, L): one roll tree for both
            # Log-tree lane reduce over the W pixel groups (stride C, wraps at L);
            # afterwards every lane holds its channel's total.  Exact f32 on the XLU.
            k = C
            while k < L:
                ssq = ssq + pltpu.roll(ssq, k, axis=1)
                k *= 2
            em = ssq * inv_m
            mean = em[0:1, :]
            var = em[1:2, :] - mean * mean
            scale = g * lax.rsqrt(var + EPS)
            shift = b - mean * scale
            return v * scale + shift                     # one FMA per element

        # ---- 1x1 conv -> BN -> ReLU: one dense bf16 MXU matmul (block-diag weight) ----
        h = jnp.dot(x.astype(jnp.bfloat16), w13_ref[0],
                    preferred_element_type=jnp.float32)
        h = jnp.maximum(bn(h, 0), 0.0)

        # ---- 3x3 conv (padding=1): horizontal shifts are folded into w2_ref, so only
        #      the two vertical (sublane) shifts + validity masks happen in-kernel, then
        #      a single fused (R, 3L) @ (3L, L) matmul accumulates all 9 taps in f32. ----
        zr = jnp.zeros((1, L), jnp.float32)
        y_idx = lax.broadcasted_iota(jnp.int32, (R, L), 0) % H
        up = jnp.where(y_idx > 0,                              # y-1 exists (kills cross-image rows)
                       jnp.concatenate([zr, h[:R - 1, :]], axis=0), 0.0)
        dn = jnp.where(y_idx < H - 1,                          # y+1 exists
                       jnp.concatenate([h[1:, :], zr], axis=0), 0.0)
        lhs = jnp.concatenate([up, h, dn], axis=1).astype(jnp.bfloat16)   # (R, 3L)
        acc = jnp.dot(lhs, w2_ref[...], preferred_element_type=jnp.float32)
        h = jnp.maximum(bn(acc, 1), 0.0)

        # ---- 1x1 conv -> BN ----
        h = jnp.dot(h.astype(jnp.bfloat16), w13_ref[1],
                    preferred_element_type=jnp.float32)
        h = bn(h, 2)

        # ---- residual add -> ReLU -> final BN ----
        h = jnp.maximum(h + x, 0.0)
        o_ref[...] = bn(h, 3)                            # full-width (lane-dense) store

    return kernel


@jax.jit
def residual_block(x_nchw, params):
    """x_nchw: (N, C, H, W) float32 (PyTorch layout). Returns (N, C, H, W)."""
    x = jnp.transpose(x_nchw, (0, 2, 3, 1)).astype(jnp.float32)    # NHWC
    N, H, W, C = x.shape
    assert W & (W - 1) == 0, "lane-reduce tree assumes W is a power of two"
    R, L = N * H, W * C

    # Lane-dense repacking, done once in the wrapper (tiny krons / tiles), bf16 weights.
    eye = jnp.eye(W, dtype=jnp.float32)
    w13 = jnp.stack([jnp.kron(eye, params["w1"]),
                     jnp.kron(eye, params["w3"])]).astype(jnp.bfloat16)   # (2, L, L)
    # Horizontal one-pixel shift matrices (zero rows at x borders), folded into the 3x3
    # weights: per vertical tap ky, sum the three kx taps -> block-tridiagonal (L, L).
    shift_mats = (jnp.eye(W, k=1, dtype=jnp.float32),    # kx=0 -> in[x-1]
                  eye,                                    # kx=1 -> in[x]
                  jnp.eye(W, k=-1, dtype=jnp.float32))    # kx=2 -> in[x+1]
    w2rows = [sum(jnp.kron(shift_mats[kx], params["w2"][ky, kx]) for kx in range(3))
              for ky in range(3)]
    w2f = jnp.concatenate(w2rows, axis=0).astype(jnp.bfloat16)            # (3L, L)
    # All 8 BatchNorm gamma/beta rows packed into one (8, L) array.
    tile = lambda v: jnp.tile(v.reshape(1, C), (1, W))
    gb = jnp.concatenate([tile(params[k]) for k in
                          ("g1", "b1", "g2", "b2", "g3", "b3", "g4", "b4")], axis=0)

    vspec = pl.BlockSpec(memory_space=pltpu.MemorySpace.VMEM)
    # Single ungridded invocation: the whole toy problem fits comfortably in VMEM.
    # TODO(synk): for production ResNet shapes, drop the kron expansion (C>=64 blows the
    # 64 MiB v7x VMEM), grid over N*H row-blocks with a 1-row halo and
    # dimension_semantics=("parallel",) (shards across v7x's 2 TensorCores), use a
    # two-phase BN (stats pass + normalize pass, since batch stats become a cross-tile
    # reduce), use >=256 rows per dot to fill the 256-wide MXU on v6e/v7x, keep the
    # lane-packed layout end-to-end instead of per-call NCHW<->NHWC transposes, and set
    # vmem_limit_bytes explicitly.
    out2d = pl.pallas_call(
        _make_kernel(N, H, W, C),
        out_shape=jax.ShapeDtypeStruct((R, L), jnp.float32),
        in_specs=[vspec] * 4,
        out_specs=vspec,
    )(x.reshape(R, L), w13, w2f, gb)

    return jnp.transpose(out2d.reshape(N, H, W, C), (0, 3, 1, 2))   # NCHW


# ----------------------------- pure-JAX reference -----------------------------
def _ref_bn(x_nhwc, gamma, beta):
    mean = jnp.mean(x_nhwc, axis=(0, 1, 2), keepdims=True)
    var = jnp.mean((x_nhwc - mean) ** 2, axis=(0, 1, 2), keepdims=True)
    return (x_nhwc - mean) * lax.rsqrt(var + EPS) * gamma + beta


def residual_block_reference(x_nchw, p):
    hp = lax.Precision.HIGHEST
    x = jnp.transpose(x_nchw, (0, 2, 3, 1)).astype(jnp.float32)
    h = jnp.einsum("nhwc,cd->nhwd", x, p["w1"], precision=hp)
    h = jnp.maximum(_ref_bn(h, p["g1"][0], p["b1"][0]), 0.0)
    h = lax.conv_general_dilated(h, p["w2"], (1, 1), "SAME",
                                 dimension_numbers=("NHWC", "HWIO", "NHWC"),
                                 precision=hp)
    h = jnp.maximum(_ref_bn(h, p["g2"][0], p["b2"][0]), 0.0)
    h = jnp.einsum("nhwc,cd->nhwd", h, p["w3"], precision=hp)
    h = _ref_bn(h, p["g3"][0], p["b3"][0])
    h = jnp.maximum(h + x, 0.0)
    h = _ref_bn(h, p["g4"][0], p["b4"][0])
    return jnp.transpose(h, (0, 3, 1, 2))


# ----------------------------------- main -------------------------------------
if __name__ == "__main__":
    N, C, H, W = 2, 8, 16, 16        # in_features = 8 -> W*C = 128 (one full lane row)
    key = jax.random.PRNGKey(0)
    keys = jax.random.split(key, 12)

    params = {
        # conv weights stored as (C_in, C_out) / HWIO for the NHWC formulation
        "w1": jax.random.normal(keys[0], (C, C), jnp.float32) * 0.1,
        "w2": jax.random.normal(keys[1], (3, 3, C, C), jnp.float32) * 0.1,
        "w3": jax.random.normal(keys[2], (C, C), jnp.float32) * 0.1,
        # BN affine params as (1, C) rows
        "g1": 1.0 + 0.1 * jax.random.normal(keys[3], (1, C), jnp.float32),
        "b1": 0.1 * jax.random.normal(keys[4], (1, C), jnp.float32),
        "g2": 1.0 + 0.1 * jax.random.normal(keys[5], (1, C), jnp.float32),
        "b2": 0.1 * jax.random.normal(keys[6], (1, C), jnp.float32),
        "g3": 1.0 + 0.1 * jax.random.normal(keys[7], (1, C), jnp.float32),
        "b3": 0.1 * jax.random.normal(keys[8], (1, C), jnp.float32),
        "g4": 1.0 + 0.1 * jax.random.normal(keys[9], (1, C), jnp.float32),
        "b4": 0.1 * jax.random.normal(keys[10], (1, C), jnp.float32),
    }
    x = jax.random.normal(keys[11], (N, C, H, W), jnp.float32)

    out = residual_block(x, params)
    jax.block_until_ready(out)
    ref = residual_block_reference(x, params)
    jax.block_until_ready(ref)

    assert out.shape == (N, C, H, W)
    # Kernel matmuls use bf16 operands with f32 accumulation (numerically equivalent to
    # the previous DEFAULT-precision f32 dots); compared against the HIGHEST-precision
    # f32 reference this is a bf16-scale comparison on unit-variance outputs, so use a
    # bf16-appropriate absolute tolerance.
    max_err = float(jnp.max(jnp.abs(out - ref)))
    if max_err < 5e-2:
        print("KERNEL_OK")
    else:
        print(f"MISMATCH max_abs_err={max_err}")
</pallas_src>

<mosaic_0001>
module attributes {stable_mosaic.version = 11 : i64} {
  func.func @kernel(%arg0: memref<32x128xf32, #tpu.memory_space<vmem>>, %arg1: memref<2x128x128xbf16, #tpu.memory_space<vmem>>, %arg2: memref<384x128xbf16, #tpu.memory_space<vmem>>, %arg3: memref<8x128xf32, #tpu.memory_space<vmem>>, %arg4: memref<32x128xf32, #tpu.memory_space<vmem>>) attributes {dimension_semantics = [], scalar_prefetch = 0 : i64, scratch_operands = 0 : i64, tpu.core_type = #tpu.core_type<tc>} {
    %c0 = arith.constant 0 : index
    %c0_0 = arith.constant 0 : index
    %0 = vector.load %arg0[%c0, %c0_0] : memref<32x128xf32, #tpu.memory_space<vmem>>, vector<32x128xf32>
    %c0_1 = arith.constant 0 : index
    %c0_2 = arith.constant 0 : index
    %1 = vector.load %arg3[%c0_1, %c0_2] : memref<8x128xf32, #tpu.memory_space<vmem>>, vector<8x128xf32>
    %2 = arith.truncf %0 : vector<32x128xf32> to vector<32x128xbf16>
    %c0_3 = arith.constant 0 : index
    %c0_4 = arith.constant 0 : index
    %c0_5 = arith.constant 0 : index
    %3 = vector.load %arg1[%c0_3, %c0_4, %c0_5] : memref<2x128x128xbf16, #tpu.memory_space<vmem>>, vector<1x128x128xbf16>
    %4 = vector.shape_cast %3 : vector<1x128x128xbf16> to vector<128x128xbf16>
    %cst = arith.constant dense<0.000000e+00> : vector<32x128xf32>
    %5 = tpu.matmul %2, %4, %cst {dimension_numbers = #tpu.dot_dimension_numbers<[1], [0], [0], [1], [0, 0, 1, 1], [], []>} : vector<32x128xbf16>, vector<128x128xbf16>, vector<32x128xf32> -> vector<32x128xf32>
    %6 = vector.extract_strided_slice %1 {offsets = [0, 0], sizes = [1, 128], strides = [1, 1]} : vector<8x128xf32> to vector<1x128xf32>
    %7 = vector.extract_strided_slice %1 {offsets = [1, 0], sizes = [1, 128], strides = [1, 1]} : vector<8x128xf32> to vector<1x128xf32>
    %cst_6 = arith.constant dense<0.000000e+00> : vector<128xf32>
    %8 = vector.multi_reduction <add>, %5, %cst_6 [0] : vector<32x128xf32> to vector<128xf32>
    %9 = vector.shape_cast %8 : vector<128xf32> to vector<1x128xf32>
    %10 = arith.mulf %5, %5 : vector<32x128xf32>
    %cst_7 = arith.constant dense<0.000000e+00> : vector<128xf32>
    %11 = vector.multi_reduction <add>, %10, %cst_7 [0] : vector<32x128xf32> to vector<128xf32>
    %12 = vector.shape_cast %11 : vector<128xf32> to vector<1x128xf32>
    %13 = tpu.concatenate %9, %12 in 0 : vector<1x128xf32>, vector<1x128xf32> -> vector<2x128xf32>
    %c8_i32 = arith.constant 8 : i32
    %14 = tpu.dynamic_rotate %13 by %c8_i32 dim 1 : vector<2x128xf32>, i32 -> vector<2x128xf32>
    %15 = arith.addf %13, %14 : vector<2x128xf32>
    %c16_i32 = arith.constant 16 : i32
    %16 = tpu.dynamic_rotate %15 by %c16_i32 dim 1 : vector<2x128xf32>, i32 -> vector<2x128xf32>
    %17 = arith.addf %15, %16 : vector<2x128xf32>
    %c32_i32 = arith.constant 32 : i32
    %18 = tpu.dynamic_rotate %17 by %c32_i32 dim 1 : vector<2x128xf32>, i32 -> vector<2x128xf32>
    %19 = arith.addf %17, %18 : vector<2x128xf32>
    %c64_i32 = arith.constant 64 : i32
    %20 = tpu.dynamic_rotate %19 by %c64_i32 dim 1 : vector<2x128xf32>, i32 -> vector<2x128xf32>
    %21 = arith.addf %19, %20 : vector<2x128xf32>
    %cst_8 = arith.constant 0.001953125 : f32
    %22 = vector.broadcast %cst_8 : f32 to vector<2x128xf32>
    %23 = arith.mulf %21, %22 : vector<2x128xf32>
    %24 = vector.extract_strided_slice %23 {offsets = [0, 0], sizes = [1, 128], strides = [1, 1]} : vector<2x128xf32> to vector<1x128xf32>
    %25 = vector.extract_strided_slice %23 {offsets = [1, 0], sizes = [1, 128], strides = [1, 1]} : vector<2x128xf32> to vector<1x128xf32>
    %26 = arith.mulf %24, %24 : vector<1x128xf32>
    %27 = arith.subf %25, %26 : vector<1x128xf32>
    %cst_9 = arith.constant 9.99999974E-6 : f32
    %28 = vector.broadcast %cst_9 : f32 to vector<1x128xf32>
    %29 = arith.addf %27, %28 : vector<1x128xf32>
    %30 = math.rsqrt %29 : vector<1x128xf32>
    %31 = arith.mulf %6, %30 : vector<1x128xf32>
    %32 = arith.mulf %24, %31 : vector<1x128xf32>
    %33 = arith.subf %7, %32 : vector<1x128xf32>
    %34 = vector.broadcast %31 : vector<1x128xf32> to vector<32x128xf32>
    %35 = arith.mulf %5, %34 : vector<32x128xf32>
    %36 = vector.broadcast %33 : vector<1x128xf32> to vector<32x128xf32>
    %37 = arith.addf %35, %36 : vector<32x128xf32>
    %cst_10 = arith.constant 0.000000e+00 : f32
    %38 = vector.broadcast %cst_10 : f32 to vector<32x128xf32>
    %39 = arith.maximumf %37, %38 : vector<32x128xf32>
    %cst_11 = arith.constant 0.000000e+00 : f32
    %40 = vector.broadcast %cst_11 : f32 to vector<1x128xf32>
    %41 = tpu.iota {dimensions = array<i32: 0>} : vector<32x128xi32>
    %c16_i32_12 = arith.constant 16 : i32
    %c0_i32 = arith.constant 0 : i32
    %42 = arith.cmpi eq, %c16_i32_12, %c0_i32 : i32
    %c1_i32 = arith.constant 1 : i32
    %43 = arith.select %42, %c1_i32, %c16_i32_12 : i32
    %44 = vector.broadcast %43 : i32 to vector<32x128xi32>
    %45 = arith.remsi %41, %44 : vector<32x128xi32>
    %c0_i32_13 = arith.constant 0 : i32
    %46 = vector.broadcast %c0_i32_13 : i32 to vector<32x128xi32>
    %47 = arith.cmpi ne, %45, %46 : vector<32x128xi32>
    %c0_i32_14 = arith.constant 0 : i32
    %48 = vector.broadcast %c0_i32_14 : i32 to vector<32x128xi32>
    %49 = arith.cmpi slt, %45, %48 : vector<32x128xi32>
    %c0_i32_15 = arith.constant 0 : i32
    %50 = arith.cmpi slt, %43, %c0_i32_15 : i32
    %51 = vector.broadcast %50 : i1 to vector<32x128xi1>
    %52 = vector.broadcast %51 : vector<32x128xi1> to vector<32x128xi1>
    %53 = arith.xori %49, %52 : vector<32x128xi1>
    %54 = arith.andi %53, %47 : vector<32x128xi1>
    %55 = vector.broadcast %43 : i32 to vector<32x128xi32>
    %56 = arith.addi %45, %55 : vector<32x128xi32>
    %57 = arith.select %54, %56, %45 : vector<32x128xi1>, vector<32x128xi32>
    %c0_i32_16 = arith.constant 0 : i32
    %58 = vector.broadcast %c0_i32_16 : i32 to vector<32x128xi32>
    %59 = arith.cmpi sgt, %57, %58 : vector<32x128xi32>
    %60 = vector.extract_strided_slice %39 {offsets = [0, 0], sizes = [31, 128], strides = [1, 1]} : vector<32x128xf32> to vector<31x128xf32>
    %61 = tpu.concatenate %40, %60 in 0 : vector<1x128xf32>, vector<31x128xf32> -> vector<32x128xf32>
    %cst_17 = arith.constant 0.000000e+00 : f32
    %62 = vector.broadcast %cst_17 : f32 to vector<32x128xf32>
    %63 = arith.select %59, %61, %62 : vector<32x128xi1>, vector<32x128xf32>
    %c15_i32 = arith.constant 15 : i32
    %64 = vector.broadcast %c15_i32 : i32 to vector<32x128xi32>
    %65 = arith.cmpi slt, %57, %64 : vector<32x128xi32>
    %66 = vector.extract_strided_slice %39 {offsets = [1, 0], sizes = [31, 128], strides = [1, 1]} : vector<32x128xf32> to vector<31x128xf32>
    %67 = tpu.concatenate %66, %40 in 0 : vector<31x128xf32>, vector<1x128xf32> -> vector<32x128xf32>
    %cst_18 = arith.constant 0.000000e+00 : f32
    %68 = vector.broadcast %cst_18 : f32 to vector<32x128xf32>
    %69 = arith.select %65, %67, %68 : vector<32x128xi1>, vector<32x128xf32>
    %70 = tpu.concatenate %63, %39, %69 in 1 : vector<32x128xf32>, vector<32x128xf32>, vector<32x128xf32> -> vector<32x384xf32>
    %71 = arith.truncf %70 : vector<32x384xf32> to vector<32x384xbf16>
    %c0_19 = arith.constant 0 : index
    %c0_20 = arith.constant 0 : index
    %72 = vector.load %arg2[%c0_19, %c0_20] : memref<384x128xbf16, #tpu.memory_space<vmem>>, vector<384x128xbf16>
    %cst_21 = arith.constant dense<0.000000e+00> : vector<32x128xf32>
    %73 = tpu.matmul %71, %72, %cst_21 {dimension_numbers = #tpu.dot_dimension_numbers<[1], [0], [0], [1], [0, 0, 1, 1], [], []>} : vector<32x384xbf16>, vector<384x128xbf16>, vector<32x128xf32> -> vector<32x128xf32>
    %74 = vector.extract_strided_slice %1 {offsets = [2, 0], sizes = [1, 128], strides = [1, 1]} : vector<8x128xf32> to vector<1x128xf32>
    %75 = vector.extract_strided_slice %1 {offsets = [3, 0], sizes = [1, 128], strides = [1, 1]} : vector<8x128xf32> to vector<1x128xf32>
    %cst_22 = arith.constant dense<0.000000e+00> : vector<128xf32>
    %76 = vector.multi_reduction <add>, %73, %cst_22 [0] : vector<32x128xf32> to vector<128xf32>
    %77 = vector.shape_cast %76 : vector<128xf32> to vector<1x128xf32>
    %78 = arith.mulf %73, %73 : vector<32x128xf32>
    %cst_23 = arith.constant dense<0.000000e+00> : vector<128xf32>
    %79 = vector.multi_reduction <add>, %78, %cst_23 [0] : vector<32x128xf32> to vector<128xf32>
    %80 = vector.shape_cast %79 : vector<128xf32> to vector<1x128xf32>
    %81 = tpu.concatenate %77, %80 in 0 : vector<1x128xf32>, vector<1x128xf32> -> vector<2x128xf32>
    %c8_i32_24 = arith.constant 8 : i32
    %82 = tpu.dynamic_rotate %81 by %c8_i32_24 dim 1 : vector<2x128xf32>, i32 -> vector<2x128xf32>
    %83 = arith.addf %81, %82 : vector<2x128xf32>
    %c16_i32_25 = arith.constant 16 : i32
    %84 = tpu.dynamic_rotate %83 by %c16_i32_25 dim 1 : vector<2x128xf32>, i32 -> vector<2x128xf32>
    %85 = arith.addf %83, %84 : vector<2x128xf32>
    %c32_i32_26 = arith.constant 32 : i32
    %86 = tpu.dynamic_rotate %85 by %c32_i32_26 dim 1 : vector<2x128xf32>, i32 -> vector<2x128xf32>
    %87 = arith.addf %85, %86 : vector<2x128xf32>
    %c64_i32_27 = arith.constant 64 : i32
    %88 = tpu.dynamic_rotate %87 by %c64_i32_27 dim 1 : vector<2x128xf32>, i32 -> vector<2x128xf32>
    %89 = arith.addf %87, %88 : vector<2x128xf32>
    %cst_28 = arith.constant 0.001953125 : f32
    %90 = vector.broadcast %cst_28 : f32 to vector<2x128xf32>
    %91 = arith.mulf %89, %90 : vector<2x128xf32>
    %92 = vector.extract_strided_slice %91 {offsets = [0, 0], sizes = [1, 128], strides = [1, 1]} : vector<2x128xf32> to vector<1x128xf32>
    %93 = vector.extract_strided_slice %91 {offsets = [1, 0], sizes = [1, 128], strides = [1, 1]} : vector<2x128xf32> to vector<1x128xf32>
    %94 = arith.mulf %92, %92 : vector<1x128xf32>
    %95 = arith.subf %93, %94 : vector<1x128xf32>
    %cst_29 = arith.constant 9.99999974E-6 : f32
    %96 = vector.broadcast %cst_29 : f32 to vector<1x128xf32>
    %97 = arith.addf %95, %96 : vector<1x128xf32>
    %98 = math.rsqrt %97 : vector<1x128xf32>
    %99 = arith.mulf %74, %98 : vector<1x128xf32>
    %100 = arith.mulf %92, %99 : vector<1x128xf32>
    %101 = arith.subf %75, %100 : vector<1x128xf32>
    %102 = vector.broadcast %99 : vector<1x128xf32> to vector<32x128xf32>
    %103 = arith.mulf %73, %102 : vector<32x128xf32>
    %104 = vector.broadcast %101 : vector<1x128xf32> to vector<32x128xf32>
    %105 = arith.addf %103, %104 : vector<32x128xf32>
    %cst_30 = arith.constant 0.000000e+00 : f32
    %106 = vector.broadcast %cst_30 : f32 to vector<32x128xf32>
    %107 = arith.maximumf %105, %106 : vector<32x128xf32>
    %108 = arith.truncf %107 : vector<32x128xf32> to vector<32x128xbf16>
    %c1 = arith.constant 1 : index
    %c0_31 = arith.constant 0 : index
    %c0_32 = arith.constant 0 : index
    %109 = vector.load %arg1[%c1, %c0_31, %c0_32] : memref<2x128x128xbf16, #tpu.memory_space<vmem>>, vector<1x128x128xbf16>
    %110 = vector.shape_cast %109 : vector<1x128x128xbf16> to vector<128x128xbf16>
    %cst_33 = arith.constant dense<0.000000e+00> : vector<32x128xf32>
    %111 = tpu.matmul %108, %110, %cst_33 {dimension_numbers = #tpu.dot_dimension_numbers<[1], [0], [0], [1], [0, 0, 1, 1], [], []>} : vector<32x128xbf16>, vector<128x128xbf16>, vector<32x128xf32> -> vector<32x128xf32>
    %112 = vector.extract_strided_slice %1 {offsets = [4, 0], sizes = [1, 128], strides = [1, 1]} : vector<8x128xf32> to vector<1x128xf32>
    %113 = vector.extract_strided_slice %1 {offsets = [5, 0], sizes = [1, 128], strides = [1, 1]} : vector<8x128xf32> to vector<1x128xf32>
    %cst_34 = arith.constant dense<0.000000e+00> : vector<128xf32>
    %114 = vector.multi_reduction <add>, %111, %cst_34 [0] : vector<32x128xf32> to vector<128xf32>
    %115 = vector.shape_cast %114 : vector<128xf32> to vector<1x128xf32>
    %116 = arith.mulf %111, %111 : vector<32x128xf32>
    %cst_35 = arith.constant dense<0.000000e+00> : vector<128xf32>
    %117 = vector.multi_reduction <add>, %116, %cst_35 [0] : vector<32x128xf32> to vector<128xf32>
    %118 = vector.shape_cast %117 : vector<128xf32> to vector<1x128xf32>
    %119 = tpu.concatenate %115, %118 in 0 : vector<1x128xf32>, vector<1x128xf32> -> vector<2x128xf32>
    %c8_i32_36 = arith.constant 8 : i32
    %120 = tpu.dynamic_rotate %119 by %c8_i32_36 dim 1 : vector<2x128xf32>, i32 -> vector<2x128xf32>
    %121 = arith.addf %119, %120 : vector<2x128xf32>
    %c16_i32_37 = arith.constant 16 : i32
    %122 = tpu.dynamic_rotate %121 by %c16_i32_37 dim 1 : vector<2x128xf32>, i32 -> vector<2x128xf32>
    %123 = arith.addf %121, %122 : vector<2x128xf32>
    %c32_i32_38 = arith.constant 32 : i32
    %124 = tpu.dynamic_rotate %123 by %c32_i32_38 dim 1 : vector<2x128xf32>, i32 -> vector<2x128xf32>
    %125 = arith.addf %123, %124 : vector<2x128xf32>
    %c64_i32_39 = arith.constant 64 : i32
    %126 = tpu.dynamic_rotate %125 by %c64_i32_39 dim 1 : vector<2x128xf32>, i32 -> vector<2x128xf32>
    %127 = arith.addf %125, %126 : vector<2x128xf32>
    %cst_40 = arith.constant 0.001953125 : f32
    %128 = vector.broadcast %cst_40 : f32 to vector<2x128xf32>
    %129 = arith.mulf %127, %128 : vector<2x128xf32>
    %130 = vector.extract_strided_slice %129 {offsets = [0, 0], sizes = [1, 128], strides = [1, 1]} : vector<2x128xf32> to vector<1x128xf32>
    %131 = vector.extract_strided_slice %129 {offsets = [1, 0], sizes = [1, 128], strides = [1, 1]} : vector<2x128xf32> to vector<1x128xf32>
    %132 = arith.mulf %130, %130 : vector<1x128xf32>
    %133 = arith.subf %131, %132 : vector<1x128xf32>
    %cst_41 = arith.constant 9.99999974E-6 : f32
    %134 = vector.broadcast %cst_41 : f32 to vector<1x128xf32>
    %135 = arith.addf %133, %134 : vector<1x128xf32>
    %136 = math.rsqrt %135 : vector<1x128xf32>
    %137 = arith.mulf %112, %136 : vector<1x128xf32>
    %138 = arith.mulf %130, %137 : vector<1x128xf32>
    %139 = arith.subf %113, %138 : vector<1x128xf32>
    %140 = vector.broadcast %137 : vector<1x128xf32> to vector<32x128xf32>
    %141 = arith.mulf %111, %140 : vector<32x128xf32>
    %142 = vector.broadcast %139 : vector<1x128xf32> to vector<32x128xf32>
    %143 = arith.addf %141, %142 : vector<32x128xf32>
    %144 = arith.addf %143, %0 : vector<32x128xf32>
    %cst_42 = arith.constant 0.000000e+00 : f32
    %145 = vector.broadcast %cst_42 : f32 to vector<32x128xf32>
    %146 = arith.maximumf %144, %145 : vector<32x128xf32>
    %147 = vector.extract_strided_slice %1 {offsets = [6, 0], sizes = [1, 128], strides = [1, 1]} : vector<8x128xf32> to vector<1x128xf32>
    %148 = vector.extract_strided_slice %1 {offsets = [7, 0], sizes = [1, 128], strides = [1, 1]} : vector<8x128xf32> to vector<1x128xf32>
    %cst_43 = arith.constant dense<0.000000e+00> : vector<128xf32>
    %149 = vector.multi_reduction <add>, %146, %cst_43 [0] : vector<32x128xf32> to vector<128xf32>
    %150 = vector.shape_cast %149 : vector<128xf32> to vector<1x128xf32>
    %151 = arith.mulf %146, %146 : vector<32x128xf32>
    %cst_44 = arith.constant dense<0.000000e+00> : vector<128xf32>
    %152 = vector.multi_reduction <add>, %151, %cst_44 [0] : vector<32x128xf32> to vector<128xf32>
    %153 = vector.shape_cast %152 : vector<128xf32> to vector<1x128xf32>
    %154 = tpu.concatenate %150, %153 in 0 : vector<1x128xf32>, vector<1x128xf32> -> vector<2x128xf32>
    %c8_i32_45 = arith.constant 8 : i32
    %155 = tpu.dynamic_rotate %154 by %c8_i32_45 dim 1 : vector<2x128xf32>, i32 -> vector<2x128xf32>
    %156 = arith.addf %154, %155 : vector<2x128xf32>
    %c16_i32_46 = arith.constant 16 : i32
    %157 = tpu.dynamic_rotate %156 by %c16_i32_46 dim 1 : vector<2x128xf32>, i32 -> vector<2x128xf32>
    %158 = arith.addf %156, %157 : vector<2x128xf32>
    %c32_i32_47 = arith.constant 32 : i32
    %159 = tpu.dynamic_rotate %158 by %c32_i32_47 dim 1 : vector<2x128xf32>, i32 -> vector<2x128xf32>
    %160 = arith.addf %158, %159 : vector<2x128xf32>
    %c64_i32_48 = arith.constant 64 : i32
    %161 = tpu.dynamic_rotate %160 by %c64_i32_48 dim 1 : vector<2x128xf32>, i32 -> vector<2x128xf32>
    %162 = arith.addf %160, %161 : vector<2x128xf32>
    %cst_49 = arith.constant 0.001953125 : f32
    %163 = vector.broadcast %cst_49 : f32 to vector<2x128xf32>
    %164 = arith.mulf %162, %163 : vector<2x128xf32>
    %165 = vector.extract_strided_slice %164 {offsets = [0, 0], sizes = [1, 128], strides = [1, 1]} : vector<2x128xf32> to vector<1x128xf32>
    %166 = vector.extract_strided_slice %164 {offsets = [1, 0], sizes = [1, 128], strides = [1, 1]} : vector<2x128xf32> to vector<1x128xf32>
    %167 = arith.mulf %165, %165 : vector<1x128xf32>
    %168 = arith.subf %166, %167 : vector<1x128xf32>
    %cst_50 = arith.constant 9.99999974E-6 : f32
    %169 = vector.broadcast %cst_50 : f32 to vector<1x128xf32>
    %170 = arith.addf %168, %169 : vector<1x128xf32>
    %171 = math.rsqrt %170 : vector<1x128xf32>
    %172 = arith.mulf %147, %171 : vector<1x128xf32>
    %173 = arith.mulf %165, %172 : vector<1x128xf32>
    %174 = arith.subf %148, %173 : vector<1x128xf32>
    %175 = vector.broadcast %172 : vector<1x128xf32> to vector<32x128xf32>
    %176 = arith.mulf %146, %175 : vector<32x128xf32>
    %177 = vector.broadcast %174 : vector<1x128xf32> to vector<32x128xf32>
    %178 = arith.addf %176, %177 : vector<32x128xf32>
    %c0_51 = arith.constant 0 : index
    %c0_52 = arith.constant 0 : index
    %179 = vector.load %arg4[%c0_51, %c0_52] : memref<32x128xf32, #tpu.memory_space<vmem>>, vector<32x128xf32>
    tpu.vector_store %arg4[%c0_51, %c0_52], %178 {strides = array<i32>} : memref<32x128xf32, #tpu.memory_space<vmem>>, vector<32x128xf32>,
    return
  }
}

</mosaic_0001>

<llo_original>
// kernel: residual_block.1
$region0: #{residual_block.1}
  #allocation0 [shape = 'u32[]', space=smem, size = 0x4, offset = 0x4, fixed_abs, tag = 'smem constant byte address 0x4 - core index']
  #allocation1 [shape = 'u32[144,128]{1,0:T(1,128)}', space=vmem, size = 0x12000, scoped, tag = 'internal scratch']
  %s0 = inlined_call_operand.vmem [shape: f32[32,128], index: 0, kind: input, shape index: {}]
  %s1 = inlined_call_operand.vmem [shape: bf16[2,128,128], index: 1, kind: input, shape index: {}]
  %s2 = inlined_call_operand.vmem [shape: bf16[384,128], index: 2, kind: input, shape index: {}]
  %s3 = inlined_call_operand.vmem [shape: f32[8,128], index: 3, kind: input, shape index: {}]
  %s4 = inlined_call_operand.vmem [shape: f32[32,128], index: 4, kind: output, shape index: {}]
  %s5 = sld [smem:[#allocation0]]
  $region26: #{residual_block.1} parent=0
    _
  %s7 = ssub.s32 1, %s5
  %s8 = scalar_select 0, %s7, %s5
  // Predicated region
  $region2: #{residual_block.1} parent=0 // pred_check
    _
  $region3: #{residual_block.1} parent=0 // pred_check_branch
    %10 = sbr.rel (0) target = $region5
  $region4: #{residual_block.1} parent=0 // pred_region
    _
  $region5: #{residual_block.1} parent=0 // pred_fallthru
    _
  // Predicated region
  $region6: #{residual_block.1} parent=0 // pred_check
    _
  $region7: #{residual_block.1} parent=0 // pred_check_branch
    %12 = sbr.rel (0) target = $region9
  $region8: #{residual_block.1} parent=0 // pred_region
    _
  $region9: #{residual_block.1} parent=0 // pred_fallthru
    _
  // Predicated region
  $region10: #{residual_block.1} parent=0 // pred_check
    _
  $region11: #{residual_block.1} parent=0 // pred_check_branch
    %14 = sbr.rel (0) target = $region13
  $region12: #{residual_block.1} parent=0 // pred_region
    _
  $region13: #{residual_block.1} parent=0 // pred_fallthru
    _
  // Predicated region
  $region14: #{residual_block.1} parent=0 // pred_check
    _
  $region15: #{residual_block.1} parent=0 // pred_check_branch
    %16 = sbr.rel (0) target = $region17
  $region16: #{residual_block.1} parent=0 // pred_region
    _
  $region17: #{residual_block.1} parent=0 // pred_fallthru
    _
  %v18 = vld [vmem:[%s0] sm:$0xff]
  %v19 = vld [vmem:[%s0 + $0x8] sm:$0xff]
  %v20 = vld [vmem:[%s0 + $0x10] sm:$0xff]
  %v21 = vld [vmem:[%s0 + $0x18] sm:$0xff]
  %v22 = vld [vmem:[%s3] sm:$0xff]
  %v23 = vpack.c.bf16 %v19, %v18
  %v24 = vpack.c.bf16 %v21, %v20
  %v25 = vld [vmem:[%s1] sm:$0xf]
  %v26 = vld [vmem:[%s1 + $0x4] sm:$0xf]
  %v27 = vld [vmem:[%s1 + $0x8] sm:$0xf]
  %v28 = vld [vmem:[%s1 + $0xc] sm:$0xf]
  %v29 = vld [vmem:[%s1 + $0x10] sm:$0xf]
  %v30 = vld [vmem:[%s1 + $0x14] sm:$0xf]
  %v31 = vld [vmem:[%s1 + $0x18] sm:$0xf]
  %v32 = vld [vmem:[%s1 + $0x1c] sm:$0xf]
  %v33 = vld [vmem:[%s1 + $0x20] sm:$0xf]
  %v34 = vld [vmem:[%s1 + $0x24] sm:$0xf]
  %v35 = vld [vmem:[%s1 + $0x28] sm:$0xf]
  %v36 = vld [vmem:[%s1 + $0x2c] sm:$0xf]
  %v37 = vld [vmem:[%s1 + $0x30] sm:$0xf]
  %v38 = vld [vmem:[%s1 + $0x34] sm:$0xf]
  %v39 = vld [vmem:[%s1 + $0x38] sm:$0xf]
  %v40 = vld [vmem:[%s1 + $0x3c] sm:$0xf]
  %v57 = vunpack.c.l.b16 %v25
  %v58 = vunpack.c.l.b16 %v26
  %v59 = vunpack.c.l.b16 %v27
  %v60 = vunpack.c.l.b16 %v28
  %v61 = vunpack.c.l.b16 %v29
  %v62 = vunpack.c.l.b16 %v30
  %v63 = vunpack.c.l.b16 %v31
  %v64 = vunpack.c.l.b16 %v32
  %v65 = vunpack.c.l.b16 %v33
  %v66 = vunpack.c.l.b16 %v34
  %v67 = vunpack.c.l.b16 %v35
  %v68 = vunpack.c.l.b16 %v36
  %v69 = vunpack.c.l.b16 %v37
  %v70 = vunpack.c.l.b16 %v38
  %v71 = vunpack.c.l.b16 %v39
  %v72 = vunpack.c.l.b16 %v40
  %v73 = vpack.c.b16 %v58, %v57
  %v74 = vpack.c.b16 %v60, %v59
  %v75 = vpack.c.b16 %v62, %v61
  %v76 = vpack.c.b16 %v64, %v63
  %v77 = vpack.c.b16 %v66, %v65
  %v78 = vpack.c.b16 %v68, %v67
  %v79 = vpack.c.b16 %v70, %v69
  %v80 = vpack.c.b16 %v72, %v71
  %89 = vmatprep.subr.bf16.mxu0 0
  %90 = vmatpush1.bf16.msra.mxu0 %v73
  %91 = vmatprep.subr.bf16.mxu0 0
  %92 = vmatpush1.bf16.msra.mxu0 %v74
  %93 = vmatprep.subr.bf16.mxu0 0
  %94 = vmatpush1.bf16.msra.mxu0 %v75
  %95 = vmatprep.subr.bf16.mxu0 0
  %96 = vmatpush1.bf16.msra.mxu0 %v76
  %97 = vmatprep.subr.bf16.mxu0 0
  %98 = vmatpush1.bf16.msra.mxu0 %v77
  %99 = vmatprep.subr.bf16.mxu0 0
  %100 = vmatpush1.bf16.msra.mxu0 %v78
  %101 = vmatprep.subr.bf16.mxu0 0
  %102 = vmatpush1.bf16.msra.mxu0 %v79
  %103 = vmatprep.subr.bf16.mxu0 0
  %104 = vmatpush1.bf16.msra.mxu0 %v80
  %105 = vmatprep.subr.bf16.mxu0 0
  %106 = vmatpush1.bf16.msra.mxu0 0
  %107 = vmatprep.subr.bf16.mxu0 0
  %108 = vmatpush1.bf16.msra.mxu0 0
  %109 = vmatprep.subr.bf16.mxu0 0
  %110 = vmatpush1.bf16.msra.mxu0 0
  %111 = vmatprep.subr.bf16.mxu0 0
  %112 = vmatpush1.bf16.msra.mxu0 0
  %113 = vmatprep.subr.bf16.mxu0 0
  %114 = vmatpush1.bf16.msra.mxu0 0
  %115 = vmatprep.subr.bf16.mxu0 0
  %116 = vmatpush1.bf16.msra.mxu0 0
  %117 = vmatprep.subr.bf16.mxu0 0
  %118 = vmatpush1.bf16.msra.mxu0 0
  %119 = vmatprep.subr.bf16.mxu0 0
  %120 = vmatpush1.bf16.msra.mxu0 0
  %121 = vmatprep.mubr.bf16.mxu0 0
  %122 = vmatmul.mubr.bf16.gmra.mrb[0].mxu0 %v23
  %v123 = vpop.f32.mrb[0].mxu0
  %v124 = vadd.f32 0.0, %v123
  %v125 = vpop.f32.mrb[0].mxu0
  %v126 = vpop.f32.mrb[0].mxu0
  %v127 = vadd.f32 0.0, %v126
  %v128 = vpop.f32.mrb[0].mxu0
  %129 = vmatprep.mubr.bf16.mxu0 0
  %130 = vmatmul.mubr.bf16.gmra.mrb[0].mxu0 %v24
  %v131 = vpop.f32.mrb[0].mxu0
  %v132 = vadd.f32 0.0, %v131
  %v133 = vpop.f32.mrb[0].mxu0
  %v134 = vpop.f32.mrb[0].mxu0
  %v135 = vadd.f32 0.0, %v134
  %v136 = vpop.f32.mrb[0].mxu0
  %137 = vdwg.mxu0
  %v138 = vadd.f32 %v124, %v127
  %v139 = vadd.f32 %v138, %v132
  %v140 = vadd.f32 %v139, %v135
  %v141 = vrot.slane %v140, 4
  %v142 = vadd.f32 %v140, %v141
  %v143 = vrot.slane %v142, 2
  %v144 = vadd.f32 %v142, %v143
  %v145 = vrot.slane %v144, 1
  %v146 = vadd.f32 %v144, %v145
  %v147 = vmul.f32 %v124, %v124
  %v148 = vmul.f32 %v127, %v127
  %v149 = vmul.f32 %v132, %v132
  %v150 = vmul.f32 %v135, %v135
  %v151 = vadd.f32 %v147, %v148
  %v152 = vadd.f32 %v151, %v149
  %v153 = vadd.f32 %v152, %v150
  %v154 = vrot.slane %v153, 4
  %v155 = vadd.f32 %v153, %v154
  %v156 = vrot.slane %v155, 2
  %v157 = vadd.f32 %v155, %v156
  %v158 = vrot.slane %v157, 1
  %v159 = vadd.f32 %v157, %v158
  %vm160 = vcmask 1040384
  %v161 = vsel %vm160, %v146, %v159
  %162 = vrot.lane.b32.xlu0 %v161, 8
  %v163 = vpop.permute.xlu0 %162
  %v164 = vadd.f32 %v161, %v163
  %165 = vrot.lane.b32.xlu0 %v164, 16
  %v166 = vpop.permute.xlu0 %165
  %v167 = vadd.f32 %v164, %v166
  %168 = vrot.lane.b32.xlu0 %v167, 32
  %v169 = vpop.permute.xlu0 %168
  %v170 = vadd.f32 %v167, %v169
  %171 = vrot.lane.b32.xlu0 %v170, 64
  %v172 = vpop.permute.xlu0 %171
  %v173 = vadd.f32 %v170, %v172
  %v174 = vmul.f32 %v173, 0.001953125
  %v175 = vmul.f32 %v174, %v174
  %v177 = vrot.slane %v175, 7
  %v179 = vsub.f32 %v174, %v177
  %v180 = vadd.f32 %v179, 1e-05
  %v181 = vrsqrt.pop %v180
  %v183 = vrot.slane %v181, 1
  %v185 = vmul.f32 %v22, %v183
  %v186 = vmul.f32 %v174, %v185
  %v188 = vrot.slane %v186, 7
  %v190 = vsub.f32 %v22, %v188
  %v191 = vlaneseq
  %v192 = vshrl.u32 %v191, 7
  %v193 = vsub.s32 0, %v192
  %v194 = vrot.slane %v185, %v193
  %v195 = vmul.f32 %v124, %v194
  %v196 = vmul.f32 %v127, %v194
  %v197 = vmul.f32 %v132, %v194
  %v198 = vmul.f32 %v135, %v194
  %v199 = vlaneseq
  %v200 = vshrl.u32 %v199, 7
  %v201 = vsub.s32 1, %v200
  %v202 = vrot.slane %v190, %v201
  %v203 = vadd.f32 %v195, %v202
  %v204 = vadd.f32 %v196, %v202
  %v205 = vadd.f32 %v197, %v202
  %v206 = vadd.f32 %v198, %v202
  %v207 = vmax.f32 %v203, 0.0
  %v208 = vmax.f32 %v204, 0.0
  %v209 = vmax.f32 %v205, 0.0
  %v210 = vmax.f32 %v206, 0.0
  %v211 = vlaneseq
  %v212 = vshrl.u32 %v211, 7
  %v213 = vadd.s32 %v212, 8
  %v214 = vadd.s32 %v212, 16
  %v215 = vadd.s32 %v212, 24
  %vm216 = vcmp.lt.s32.totalorder %v212, 0
  %v217 = vsub.s32 0, %v212
  %v218 = vsel %vm216, %v217, %v212
  %v219 = vshrl.u32 %v218, 4
  %v220 = vand.u32 %v218, 15
  %v221 = vsub.s32 0, %v220
  %v222 = vsel %vm216, %v221, %v220
  %vm223 = vcmp.lt.s32.totalorder %v213, 0
  %v224 = vsub.s32 0, %v213
  %v225 = vsel %vm223, %v224, %v213
  %v226 = vshrl.u32 %v225, 4
  %v227 = vand.u32 %v225, 15
  %v228 = vsub.s32 0, %v227
  %v229 = vsel %vm223, %v228, %v227
  %vm230 = vcmp.lt.s32.totalorder %v214, 0
  %v231 = vsub.s32 0, %v214
  %v232 = vsel %vm230, %v231, %v214
  %v233 = vshrl.u32 %v232, 4
  %v234 = vand.u32 %v232, 15
  %v235 = vsub.s32 0, %v234
  %v236 = vsel %vm230, %v235, %v234
  %vm237 = vcmp.lt.s32.totalorder %v215, 0
  %v238 = vsub.s32 0, %v215
  %v239 = vsel %vm237, %v238, %v215
  %v240 = vshrl.u32 %v239, 4
  %v241 = vand.u32 %v239, 15
  %v242 = vsub.s32 0, %v241
  %v243 = vsel %vm237, %v242, %v241
  %vm244 = vcmp.ne.s32.totalorder %v222, 0
  %vm245 = vcmp.ne.s32.totalorder %v229, 0
  %vm246 = vcmp.ne.s32.totalorder %v236, 0
  %vm247 = vcmp.ne.s32.totalorder %v243, 0
  %vm248 = vcmp.lt.s32.totalorder %v222, 0
  %vm249 = vcmp.lt.s32.totalorder %v229, 0
  %vm250 = vcmp.lt.s32.totalorder %v236, 0
  %vm251 = vcmp.lt.s32.totalorder %v243, 0
  %vm252 = vmand %vm248, %vm244
  %vm253 = vmand %vm249, %vm245
  %vm254 = vmand %vm250, %vm246
  %vm255 = vmand %vm251, %vm247
  %v256 = vadd.s32 %v222, 16
  %v257 = vadd.s32 %v229, 16
  %v258 = vadd.s32 %v236, 16
  %v259 = vadd.s32 %v243, 16
  %v260 = vsel %vm252, %v256, %v222
  %v261 = vsel %vm253, %v257, %v229
  %v262 = vsel %vm254, %v258, %v236
  %v263 = vsel %vm255, %v259, %v243
  %vm264 = vcmp.gt.s32.totalorder %v260, 0
  %vm265 = vcmp.gt.s32.totalorder %v261, 0
  %vm266 = vcmp.gt.s32.totalorder %v262, 0
  %vm267 = vcmp.gt.s32.totalorder %v263, 0
  %v272 = vrot.slane %v207, 7
  %v273 = vrot.slane %v208, 7
  %v274 = vsel %vm160, %v272, %v273
  %v275 = vrot.slane %v209, 7
  %v276 = vsel %vm160, %v273, %v275
  %v277 = vrot.slane %v210, 7
  %v278 = vsel %vm160, %v275, %v277
  %v283 = vsel %vm160, 0.0, %v272
  %v284 = vsel %vm264, %v283, 0.0
  %v285 = vsel %vm265, %v274, 0.0
  %v286 = vsel %vm266, %v276, 0.0
  %v287 = vsel %vm267, %v278, 0.0
  %vm288 = vcmp.lt.s32.totalorder %v260, 15
  %vm289 = vcmp.lt.s32.totalorder %v261, 15
  %vm290 = vcmp.lt.s32.totalorder %v262, 15
  %vm291 = vcmp.lt.s32.totalorder %v263, 15
  %vm292 = vcmask 1046528
  %v293 = vrot.slane %v207, 1
  %v294 = vrot.slane %v208, 1
  %v295 = vsel %vm292, %v293, %v294
  %v296 = vrot.slane %v209, 1
  %v297 = vsel %vm292, %v294, %v296
  %v298 = vrot.slane %v210, 1
  %v299 = vsel %vm292, %v296, %v298
  %v304 = vsel %vm292, %v298, 0.0
  %v305 = vsel %vm288, %v295, 0.0
  %v306 = vsel %vm289, %v297, 0.0
  %v307 = vsel %vm290, %v299, 0.0
  %v308 = vsel %vm291, %v304, 0.0
  %v309 = vpack.c.bf16 %v285, %v284
  %v310 = vpack.c.bf16 %v208, %v207
  %v311 = vpack.c.bf16 %v306, %v305
  %v312 = vpack.c.bf16 %v287, %v286
  %v313 = vpack.c.bf16 %v210, %v209
  %v314 = vpack.c.bf16 %v308, %v307
  %v315 = vld [vmem:[%s2] sm:$0xf]
  %v316 = vld [vmem:[%s2 + $0x4] sm:$0xf]
  %v317 = vld [vmem:[%s2 + $0x8] sm:$0xf]
  %v318 = vld [vmem:[%s2 + $0xc] sm:$0xf]
  %v319 = vld [vmem:[%s2 + $0x10] sm:$0xf]
  %v320 = vld [vmem:[%s2 + $0x14] sm:$0xf]
  %v321 = vld [vmem:[%s2 + $0x18] sm:$0xf]
  %v322 = vld [vmem:[%s2 + $0x1c] sm:$0xf]
  %v323 = vld [vmem:[%s2 + $0x20] sm:$0xf]
  %v324 = vld [vmem:[%s2 + $0x24] sm:$0xf]
  %v325 = vld [vmem:[%s2 + $0x28] sm:$0xf]
  %v326 = vld [vmem:[%s2 + $0x2c] sm:$0xf]
  %v327 = vld [vmem:[%s2 + $0x30] sm:$0xf]
  %v328 = vld [vmem:[%s2 + $0x34] sm:$0xf]
  %v329 = vld [vmem:[%s2 + $0x38] sm:$0xf]
  %v330 = vld [vmem:[%s2 + $0x3c] sm:$0xf]
  %v331 = vld [vmem:[%s2 + $0x40] sm:$0xf]
  %v332 = vld [vmem:[%s2 + $0x44] sm:$0xf]
  %v333 = vld [vmem:[%s2 + $0x48] sm:$0xf]
  %v334 = vld [vmem:[%s2 + $0x4c] sm:$0xf]
  %v335 = vld [vmem:[%s2 + $0x50] sm:$0xf]
  %v336 = vld [vmem:[%s2 + $0x54] sm:$0xf]
  %v337 = vld [vmem:[%s2 + $0x58] sm:$0xf]
  %v338 = vld [vmem:[%s2 + $0x5c] sm:$0xf]
  %v339 = vld [vmem:[%s2 + $0x60] sm:$0xf]
  %v340 = vld [vmem:[%s2 + $0x64] sm:$0xf]
  %v341 = vld [vmem:[%s2 + $0x68] sm:$0xf]
  %v342 = vld [vmem:[%s2 + $0x6c] sm:$0xf]
  %v343 = vld [vmem:[%s2 + $0x70] sm:$0xf]
  %v344 = vld [vmem:[%s2 + $0x74] sm:$0xf]
  %v345 = vld [vmem:[%s2 + $0x78] sm:$0xf]
  %v346 = vld [vmem:[%s2 + $0x7c] sm:$0xf]
  %v347 = vld [vmem:[%s2 + $0x80] sm:$0xf]
  %v348 = vld [vmem:[%s2 + $0x84] sm:$0xf]
  %v349 = vld [vmem:[%s2 + $0x88] sm:$0xf]
  %v350 = vld [vmem:[%s2 + $0x8c] sm:$0xf]
  %v351 = vld [vmem:[%s2 + $0x90] sm:$0xf]
  %v352 = vld [vmem:[%s2 + $0x94] sm:$0xf]
  %v353 = vld [vmem:[%s2 + $0x98] sm:$0xf]
  %v354 = vld [vmem:[%s2 + $0x9c] sm:$0xf]
  %v355 = vld [vmem:[%s2 + $0xa0] sm:$0xf]
  %v356 = vld [vmem:[%s2 + $0xa4] sm:$0xf]
  %v357 = vld [vmem:[%s2 + $0xa8] sm:$0xf]
  %v358 = vld [vmem:[%s2 + $0xac] sm:$0xf]
  %v359 = vld [vmem:[%s2 + $0xb0] sm:$0xf]
  %v360 = vld [vmem:[%s2 + $0xb4] sm:$0xf]
  %v361 = vld [vmem:[%s2 + $0xb8] sm:$0xf]
  %v362 = vld [vmem:[%s2 + $0xbc] sm:$0xf]
  %v411 = vunpack.c.l.b16 %v315
  %v412 = vunpack.c.l.b16 %v316
  %v413 = vunpack.c.l.b16 %v317
  %v414 = vunpack.c.l.b16 %v318
  %v415 = vunpack.c.l.b16 %v319
  %v416 = vunpack.c.l.b16 %v320
  %v417 = vunpack.c.l.b16 %v321
  %v418 = vunpack.c.l.b16 %v322
  %v419 = vunpack.c.l.b16 %v323
  %v420 = vunpack.c.l.b16 %v324
  %v421 = vunpack.c.l.b16 %v325
  %v422 = vunpack.c.l.b16 %v326
  %v423 = vunpack.c.l.b16 %v327
  %v424 = vunpack.c.l.b16 %v328
  %v425 = vunpack.c.l.b16 %v329
  %v426 = vunpack.c.l.b16 %v330
  %v427 = vunpack.c.l.b16 %v331
  %v428 = vunpack.c.l.b16 %v332
  %v429 = vunpack.c.l.b16 %v333
  %v430 = vunpack.c.l.b16 %v334
  %v431 = vunpack.c.l.b16 %v335
  %v432 = vunpack.c.l.b16 %v336
  %v433 = vunpack.c.l.b16 %v337
  %v434 = vunpack.c.l.b16 %v338
  %v435 = vunpack.c.l.b16 %v339
  %v436 = vunpack.c.l.b16 %v340
  %v437 = vunpack.c.l.b16 %v341
  %v438 = vunpack.c.l.b16 %v342
  %v439 = vunpack.c.l.b16 %v343
  %v440 = vunpack.c.l.b16 %v344
  %v441 = vunpack.c.l.b16 %v345
  %v442 = vunpack.c.l.b16 %v346
  %v443 = vunpack.c.l.b16 %v347
  %v444 = vunpack.c.l.b16 %v348
  %v445 = vunpack.c.l.b16 %v349
  %v446 = vunpack.c.l.b16 %v350
  %v447 = vunpack.c.l.b16 %v351
  %v448 = vunpack.c.l.b16 %v352
  %v449 = vunpack.c.l.b16 %v353
  %v450 = vunpack.c.l.b16 %v354
  %v451 = vunpack.c.l.b16 %v355
  %v452 = vunpack.c.l.b16 %v356
  %v453 = vunpack.c.l.b16 %v357
  %v454 = vunpack.c.l.b16 %v358
  %v455 = vunpack.c.l.b16 %v359
  %v456 = vunpack.c.l.b16 %v360
  %v457 = vunpack.c.l.b16 %v361
  %v458 = vunpack.c.l.b16 %v362
  %v459 = vpack.c.b16 %v412, %v411
  %v460 = vpack.c.b16 %v414, %v413
  %v461 = vpack.c.b16 %v416, %v415
  %v462 = vpack.c.b16 %v418, %v417
  %v463 = vpack.c.b16 %v420, %v419
  %v464 = vpack.c.b16 %v422, %v421
  %v465 = vpack.c.b16 %v424, %v423
  %v466 = vpack.c.b16 %v426, %v425
  %v467 = vpack.c.b16 %v428, %v427
  %v468 = vpack.c.b16 %v430, %v429
  %v469 = vpack.c.b16 %v432, %v431
  %v470 = vpack.c.b16 %v434, %v433
  %v471 = vpack.c.b16 %v436, %v435
  %v472 = vpack.c.b16 %v438, %v437
  %v473 = vpack.c.b16 %v440, %v439
  %v474 = vpack.c.b16 %v442, %v441
  %v475 = vpack.c.b16 %v444, %v443
  %v476 = vpack.c.b16 %v446, %v445
  %v477 = vpack.c.b16 %v448, %v447
  %v478 = vpack.c.b16 %v450, %v449
  %v479 = vpack.c.b16 %v452, %v451
  %v480 = vpack.c.b16 %v454, %v453
  %v481 = vpack.c.b16 %v456, %v455
  %v482 = vpack.c.b16 %v458, %v457
  %507 = vmatprep.subr.bf16.mxu0 0
  %508 = vmatpush1.bf16.msra.mxu0 %v459
  %509 = vmatprep.subr.bf16.mxu0 0
  %510 = vmatpush1.bf16.msra.mxu0 %v460
  %511 = vmatprep.subr.bf16.mxu0 0
  %512 = vmatpush1.bf16.msra.mxu0 %v461
  %513 = vmatprep.subr.bf16.mxu0 0
  %514 = vmatpush1.bf16.msra.mxu0 %v462
  %515 = vmatprep.subr.bf16.mxu0 0
  %516 = vmatpush1.bf16.msra.mxu0 %v463
  %517 = vmatprep.subr.bf16.mxu0 0
  %518 = vmatpush1.bf16.msra.mxu0 %v464
  %519 = vmatprep.subr.bf16.mxu0 0
  %520 = vmatpush1.bf16.msra.mxu0 %v465
  %521 = vmatprep.subr.bf16.mxu0 0
  %522 = vmatpush1.bf16.msra.mxu0 %v466
  %523 = vmatprep.subr.bf16.mxu0 0
  %524 = vmatpush1.bf16.msra.mxu0 %v467
  %525 = vmatprep.subr.bf16.mxu0 0
  %526 = vmatpush1.bf16.msra.mxu0 %v468
  %527 = vmatprep.subr.bf16.mxu0 0
  %528 = vmatpush1.bf16.msra.mxu0 %v469
  %529 = vmatprep.subr.bf16.mxu0 0
  %530 = vmatpush1.bf16.msra.mxu0 %v470
  %531 = vmatprep.subr.bf16.mxu0 0
  %532 = vmatpush1.bf16.msra.mxu0 %v471
  %533 = vmatprep.subr.bf16.mxu0 0
  %534 = vmatpush1.bf16.msra.mxu0 %v472
  %535 = vmatprep.subr.bf16.mxu0 0
  %536 = vmatpush1.bf16.msra.mxu0 %v473
  %537 = vmatprep.subr.bf16.mxu0 0
  %538 = vmatpush1.bf16.msra.mxu0 %v474
  %539 = vmatprep.mubr.bf16.mxu0 %v310
  %540 = vmatmul.mubr.bf16.gmra.mrb[0].mxu0 %v309
  %v541 = vpop.f32.mrb[0].mxu0
  %v542 = vadd.f32 0.0, %v541
  %v543 = vpop.f32.mrb[0].mxu0
  %v544 = vpop.f32.mrb[0].mxu0
  %v545 = vadd.f32 0.0, %v544
  %v546 = vpop.f32.mrb[0].mxu0
  %547 = vmatprep.mubr.bf16.mxu0 %v313
  %548 = vmatmul.mubr.bf16.gmra.mrb[0].mxu0 %v312
  %v549 = vpop.f32.mrb[0].mxu0
  %v550 = vadd.f32 0.0, %v549
  %v551 = vpop.f32.mrb[0].mxu0
  %v552 = vpop.f32.mrb[0].mxu0
  %v553 = vadd.f32 0.0, %v552
  %v554 = vpop.f32.mrb[0].mxu0
  %555 = vdwg.mxu0
  %556 = vmatprep.subr.bf16.mxu0 0
  %557 = vmatpush1.bf16.msra.mxu0 %v475
  %558 = vmatprep.subr.bf16.mxu0 0
  %559 = vmatpush1.bf16.msra.mxu0 %v476
  %560 = vmatprep.subr.bf16.mxu0 0
  %561 = vmatpush1.bf16.msra.mxu0 %v477
  %562 = vmatprep.subr.bf16.mxu0 0
  %563 = vmatpush1.bf16.msra.mxu0 %v478
  %564 = vmatprep.subr.bf16.mxu0 0
  %565 = vmatpush1.bf16.msra.mxu0 %v479
  %566 = vmatprep.subr.bf16.mxu0 0
  %567 = vmatpush1.bf16.msra.mxu0 %v480
  %568 = vmatprep.subr.bf16.mxu0 0
  %569 = vmatpush1.bf16.msra.mxu0 %v481
  %570 = vmatprep.subr.bf16.mxu0 0
  %571 = vmatpush1.bf16.msra.mxu0 %v482
  %572 = vmatprep.subr.bf16.mxu0 0
  %573 = vmatpush1.bf16.msra.mxu0 0
  %574 = vmatprep.subr.bf16.mxu0 0
  %575 = vmatpush1.bf16.msra.mxu0 0
  %576 = vmatprep.subr.bf16.mxu0 0
  %577 = vmatpush1.bf16.msra.mxu0 0
  %578 = vmatprep.subr.bf16.mxu0 0
  %579 = vmatpush1.bf16.msra.mxu0 0
  %580 = vmatprep.subr.bf16.mxu0 0
  %581 = vmatpush1.bf16.msra.mxu0 0
  %582 = vmatprep.subr.bf16.mxu0 0
  %583 = vmatpush1.bf16.msra.mxu0 0
  %584 = vmatprep.subr.bf16.mxu0 0
  %585 = vmatpush1.bf16.msra.mxu0 0
  %586 = vmatprep.subr.bf16.mxu0 0
  %587 = vmatpush1.bf16.msra.mxu0 0
  %588 = vmatprep.mubr.bf16.mxu0 0
  %589 = vmatmul.mubr.bf16.gmra.mrb[0].mxu0 %v311
  %v590 = vpop.f32.mrb[0].mxu0
  %v591 = vadd.f32 %v542, %v590
  %v592 = vpop.f32.mrb[0].mxu0
  %v593 = vpop.f32.mrb[0].mxu0
  %v594 = vadd.f32 %v545, %v593
  %v595 = vpop.f32.mrb[0].mxu0
  %596 = vmatprep.mubr.bf16.mxu0 0
  %597 = vmatmul.mubr.bf16.gmra.mrb[0].mxu0 %v314
  %v598 = vpop.f32.mrb[0].mxu0
  %v599 = vadd.f32 %v550, %v598
  %v600 = vpop.f32.mrb[0].mxu0
  %v601 = vpop.f32.mrb[0].mxu0
  %v602 = vadd.f32 %v553, %v601
  %v603 = vpop.f32.mrb[0].mxu0
  %604 = vdwg.mxu0
  %v605 = vadd.f32 %v591, %v594
  %v606 = vadd.f32 %v605, %v599
  %v607 = vadd.f32 %v606, %v602
  %v608 = vrot.slane %v607, 4
  %v609 = vadd.f32 %v607, %v608
  %v610 = vrot.slane %v609, 2
  %v611 = vadd.f32 %v609, %v610
  %v612 = vrot.slane %v611, 1
  %v613 = vadd.f32 %v611, %v612
  %v614 = vmul.f32 %v591, %v591
  %v615 = vmul.f32 %v594, %v594
  %v616 = vmul.f32 %v599, %v599
  %v617 = vmul.f32 %v602, %v602
  %v618 = vadd.f32 %v614, %v615
  %v619 = vadd.f32 %v618, %v616
  %v620 = vadd.f32 %v619, %v617
  %v621 = vrot.slane %v620, 4
  %v622 = vadd.f32 %v620, %v621
  %v623 = vrot.slane %v622, 2
  %v624 = vadd.f32 %v622, %v623
  %v625 = vrot.slane %v624, 1
  %v626 = vadd.f32 %v624, %v625
  %v627 = vsel %vm160, %v613, %v626
  %628 = vrot.lane.b32.xlu0 %v627, 8
  %v629 = vpop.permute.xlu0 %628
  %v630 = vadd.f32 %v627, %v629
  %631 = vrot.lane.b32.xlu0 %v630, 16
  %v632 = vpop.permute.xlu0 %631
  %v633 = vadd.f32 %v630, %v632
  %634 = vrot.lane.b32.xlu0 %v633, 32
  %v635 = vpop.permute.xlu0 %634
  %v636 = vadd.f32 %v633, %v635
  %637 = vrot.lane.b32.xlu0 %v636, 64
  %v638 = vpop.permute.xlu0 %637
  %v639 = vadd.f32 %v636, %v638
  %v640 = vmul.f32 %v639, 0.001953125
  %v641 = vmul.f32 %v640, %v640
  %v643 = vrot.slane %v641, 7
  %v645 = vsub.f32 %v640, %v643
  %v646 = vadd.f32 %v645, 1e-05
  %v647 = vrsqrt.pop %v646
  %v649 = vrot.slane %v647, 7
  %v651 = vmul.f32 %v22, %v649
  %v653 = vrot.slane %v651, 2
  %v655 = vmul.f32 %v640, %v653
  %v657 = vrot.slane %v655, 5
  %v659 = vsub.f32 %v22, %v657
  %v660 = vlaneseq
  %v661 = vshrl.u32 %v660, 7
  %v662 = vsub.s32 2, %v661
  %v663 = vrot.slane %v651, %v662
  %v664 = vmul.f32 %v591, %v663
  %v665 = vmul.f32 %v594, %v663
  %v666 = vmul.f32 %v599, %v663
  %v667 = vmul.f32 %v602, %v663
  %v668 = vlaneseq
  %v669 = vshrl.u32 %v668, 7
  %v670 = vsub.s32 3, %v669
  %v671 = vrot.slane %v659, %v670
  %v672 = vadd.f32 %v664, %v671
  %v673 = vadd.f32 %v665, %v671
  %v674 = vadd.f32 %v666, %v671
  %v675 = vadd.f32 %v667, %v671
  %v676 = vmax.f32 %v672, 0.0
  %v677 = vmax.f32 %v673, 0.0
  %v678 = vmax.f32 %v674, 0.0
  %v679 = vmax.f32 %v675, 0.0
  %v680 = vpack.c.bf16 %v677, %v676
  %v681 = vpack.c.bf16 %v679, %v678
  %s682 = scalar_lea.vmem %s1, 64
  %v683 = vld [vmem:[%s682] sm:$0xf]
  %v684 = vld [vmem:[%s682 + $0x4] sm:$0xf]
  %v685 = vld [vmem:[%s682 + $0x8] sm:$0xf]
  %v686 = vld [vmem:[%s682 + $0xc] sm:$0xf]
  %v687 = vld [vmem:[%s682 + $0x10] sm:$0xf]
  %v688 = vld [vmem:[%s682 + $0x14] sm:$0xf]
  %v689 = vld [vmem:[%s682 + $0x18] sm:$0xf]
  %v690 = vld [vmem:[%s682 + $0x1c] sm:$0xf]
  %v691 = vld [vmem:[%s682 + $0x20] sm:$0xf]
  %v692 = vld [vmem:[%s682 + $0x24] sm:$0xf]
  %v693 = vld [vmem:[%s682 + $0x28] sm:$0xf]
  %v694 = vld [vmem:[%s682 + $0x2c] sm:$0xf]
  %v695 = vld [vmem:[%s682 + $0x30] sm:$0xf]
  %v696 = vld [vmem:[%s682 + $0x34] sm:$0xf]
  %v697 = vld [vmem:[%s682 + $0x38] sm:$0xf]
  %v698 = vld [vmem:[%s682 + $0x3c] sm:$0xf]
  %v715 = vunpack.c.l.b16 %v683
  %v716 = vunpack.c.l.b16 %v684
  %v717 = vunpack.c.l.b16 %v685
  %v718 = vunpack.c.l.b16 %v686
  %v719 = vunpack.c.l.b16 %v687
  %v720 = vunpack.c.l.b16 %v688
  %v721 = vunpack.c.l.b16 %v689
  %v722 = vunpack.c.l.b16 %v690
  %v723 = vunpack.c.l.b16 %v691
  %v724 = vunpack.c.l.b16 %v692
  %v725 = vunpack.c.l.b16 %v693
  %v726 = vunpack.c.l.b16 %v694
  %v727 = vunpack.c.l.b16 %v695
  %v728 = vunpack.c.l.b16 %v696
  %v729 = vunpack.c.l.b16 %v697
  %v730 = vunpack.c.l.b16 %v698
  %v731 = vpack.c.b16 %v716, %v715
  %v732 = vpack.c.b16 %v718, %v717
  %v733 = vpack.c.b16 %v720, %v719
  %v734 = vpack.c.b16 %v722, %v721
  %v735 = vpack.c.b16 %v724, %v723
  %v736 = vpack.c.b16 %v726, %v725
  %v737 = vpack.c.b16 %v728, %v727
  %v738 = vpack.c.b16 %v730, %v729
  %747 = vmatprep.subr.bf16.mxu0 0
  %748 = vmatpush1.bf16.msra.mxu0 %v731
  %749 = vmatprep.subr.bf16.mxu0 0
  %750 = vmatpush1.bf16.msra.mxu0 %v732
  %751 = vmatprep.subr.bf16.mxu0 0
  %752 = vmatpush1.bf16.msra.mxu0 %v733
  %753 = vmatprep.subr.bf16.mxu0 0
  %754 = vmatpush1.bf16.msra.mxu0 %v734
  %755 = vmatprep.subr.bf16.mxu0 0
  %756 = vmatpush1.bf16.msra.mxu0 %v735
  %757 = vmatprep.subr.bf16.mxu0 0
  %758 = vmatpush1.bf16.msra.mxu0 %v736
  %759 = vmatprep.subr.bf16.mxu0 0
  %760 = vmatpush1.bf16.msra.mxu0 %v737
  %761 = vmatprep.subr.bf16.mxu0 0
  %762 = vmatpush1.bf16.msra.mxu0 %v738
  %763 = vmatprep.subr.bf16.mxu0 0
  %764 = vmatpush1.bf16.msra.mxu0 0
  %765 = vmatprep.subr.bf16.mxu0 0
  %766 = vmatpush1.bf16.msra.mxu0 0
  %767 = vmatprep.subr.bf16.mxu0 0
  %768 = vmatpush1.bf16.msra.mxu0 0
  %769 = vmatprep.subr.bf16.mxu0 0
  %770 = vmatpush1.bf16.msra.mxu0 0
  %771 = vmatprep.subr.bf16.mxu0 0
  %772 = vmatpush1.bf16.msra.mxu0 0
  %773 = vmatprep.subr.bf16.mxu0 0
  %774 = vmatpush1.bf16.msra.mxu0 0
  %775 = vmatprep.subr.bf16.mxu0 0
  %776 = vmatpush1.bf16.msra.mxu0 0
  %777 = vmatprep.subr.bf16.mxu0 0
  %778 = vmatpush1.bf16.msra.mxu0 0
  %779 = vmatprep.mubr.bf16.mxu0 0
  %780 = vmatmul.mubr.bf16.gmra.mrb[0].mxu0 %v680
  %v781 = vpop.f32.mrb[0].mxu0
  %v782 = vadd.f32 0.0, %v781
  %v783 = vpop.f32.mrb[0].mxu0
  %v784 = vpop.f32.mrb[0].mxu0
  %v785 = vadd.f32 0.0, %v784
  %v786 = vpop.f32.mrb[0].mxu0
  %787 = vmatprep.mubr.bf16.mxu0 0
  %788 = vmatmul.mubr.bf16.gmra.mrb[0].mxu0 %v681
  %v789 = vpop.f32.mrb[0].mxu0
  %v790 = vadd.f32 0.0, %v789
  %v791 = vpop.f32.mrb[0].mxu0
  %v792 = vpop.f32.mrb[0].mxu0
  %v793 = vadd.f32 0.0, %v792
  %v794 = vpop.f32.mrb[0].mxu0
  %795 = vdwg.mxu0
  %v796 = vadd.f32 %v782, %v785
  %v797 = vadd.f32 %v796, %v790
  %v798 = vadd.f32 %v797, %v793
  %v799 = vrot.slane %v798, 4
  %v800 = vadd.f32 %v798, %v799
  %v801 = vrot.slane %v800, 2
  %v802 = vadd.f32 %v800, %v801
  %v803 = vrot.slane %v802, 1
  %v804 = vadd.f32 %v802, %v803
  %v805 = vmul.f32 %v782, %v782
  %v806 = vmul.f32 %v785, %v785
  %v807 = vmul.f32 %v790, %v790
  %v808 = vmul.f32 %v793, %v793
  %v809 = vadd.f32 %v805, %v806
  %v810 = vadd.f32 %v809, %v807
  %v811 = vadd.f32 %v810, %v808
  %v812 = vrot.slane %v811, 4
  %v813 = vadd.f32 %v811, %v812
  %v814 = vrot.slane %v813, 2
  %v815 = vadd.f32 %v813, %v814
  %v816 = vrot.slane %v815, 1
  %v817 = vadd.f32 %v815, %v816
  %v818 = vsel %vm160, %v804, %v817
  %819 = vrot.lane.b32.xlu0 %v818, 8
  %v820 = vpop.permute.xlu0 %819
  %v821 = vadd.f32 %v818, %v820
  %822 = vrot.lane.b32.xlu0 %v821, 16
  %v823 = vpop.permute.xlu0 %822
  %v824 = vadd.f32 %v821, %v823
  %825 = vrot.lane.b32.xlu0 %v824, 32
  %v826 = vpop.permute.xlu0 %825
  %v827 = vadd.f32 %v824, %v826
  %828 = vrot.lane.b32.xlu0 %v827, 64
  %v829 = vpop.permute.xlu0 %828
  %v830 = vadd.f32 %v827, %v829
  %v831 = vmul.f32 %v830, 0.001953125
  %v832 = vmul.f32 %v831, %v831
  %v834 = vrot.slane %v832, 7
  %v836 = vsub.f32 %v831, %v834
  %v837 = vadd.f32 %v836, 1e-05
  %v838 = vrsqrt.pop %v837
  %v840 = vrot.slane %v838, 5
  %v842 = vmul.f32 %v22, %v840
  %v844 = vrot.slane %v842, 4
  %v846 = vmul.f32 %v831, %v844
  %v848 = vrot.slane %v846, 3
  %v850 = vsub.f32 %v22, %v848
  %v851 = vlaneseq
  %v852 = vshrl.u32 %v851, 7
  %v853 = vsub.s32 4, %v852
  %v854 = vrot.slane %v842, %v853
  %v855 = vmul.f32 %v782, %v854
  %v856 = vmul.f32 %v785, %v854
  %v857 = vmul.f32 %v790, %v854
  %v858 = vmul.f32 %v793, %v854
  %v859 = vlaneseq
  %v860 = vshrl.u32 %v859, 7
  %v861 = vsub.s32 5, %v860
  %v862 = vrot.slane %v850, %v861
  %v863 = vadd.f32 %v855, %v862
  %v864 = vadd.f32 %v856, %v862
  %v865 = vadd.f32 %v857, %v862
  %v866 = vadd.f32 %v858, %v862
  %v867 = vadd.f32 %v863, %v18
  %v868 = vadd.f32 %v864, %v19
  %v869 = vadd.f32 %v865, %v20
  %v870 = vadd.f32 %v866, %v21
  %v871 = vmax.f32 %v867, 0.0
  %v872 = vmax.f32 %v868, 0.0
  %v873 = vmax.f32 %v869, 0.0
  %v874 = vmax.f32 %v870, 0.0
  %v875 = vadd.f32 %v871, %v872
  %v876 = vadd.f32 %v875, %v873
  %v877 = vadd.f32 %v876, %v874
  %v878 = vrot.slane %v877, 4
  %v879 = vadd.f32 %v877, %v878
  %v880 = vrot.slane %v879, 2
  %v881 = vadd.f32 %v879, %v880
  %v882 = vrot.slane %v881, 1
  %v883 = vadd.f32 %v881, %v882
  %v884 = vmul.f32 %v871, %v871
  %v885 = vmul.f32 %v872, %v872
  %v886 = vmul.f32 %v873, %v873
  %v887 = vmul.f32 %v874, %v874
  %v888 = vadd.f32 %v884, %v885
  %v889 = vadd.f32 %v888, %v886
  %v890 = vadd.f32 %v889, %v887
  %v891 = vrot.slane %v890, 4
  %v892 = vadd.f32 %v890, %v891
  %v893 = vrot.slane %v892, 2
  %v894 = vadd.f32 %v892, %v893
  %v895 = vrot.slane %v894, 1
  %v896 = vadd.f32 %v894, %v895
  %v897 = vsel %vm160, %v883, %v896
  %898 = vrot.lane.b32.xlu0 %v897, 8
  %v899 = vpop.permute.xlu0 %898
  %v900 = vadd.f32 %v897, %v899
  %901 = vrot.lane.b32.xlu0 %v900, 16
  %v902 = vpop.permute.xlu0 %901
  %v903 = vadd.f32 %v900, %v902
  %904 = vrot.lane.b32.xlu0 %v903, 32
  %v905 = vpop.permute.xlu0 %904
  %v906 = vadd.f32 %v903, %v905
  %907 = vrot.lane.b32.xlu0 %v906, 64
  %v908 = vpop.permute.xlu0 %907
  %v909 = vadd.f32 %v906, %v908
  %v910 = vmul.f32 %v909, 0.001953125
  %v911 = vmul.f32 %v910, %v910
  %v913 = vrot.slane %v911, 7
  %v915 = vsub.f32 %v910, %v913
  %v916 = vadd.f32 %v915, 1e-05
  %v917 = vrsqrt.pop %v916
  %v919 = vrot.slane %v917, 3
  %v921 = vmul.f32 %v22, %v919
  %v923 = vrot.slane %v921, 6
  %v925 = vmul.f32 %v910, %v923
  %v927 = vrot.slane %v925, 1
  %v929 = vsub.f32 %v22, %v927
  %v930 = vlaneseq
  %v931 = vshrl.u32 %v930, 7
  %v932 = vsub.s32 6, %v931
  %v933 = vrot.slane %v921, %v932
  %v934 = vmul.f32 %v871, %v933
  %v935 = vmul.f32 %v872, %v933
  %v936 = vmul.f32 %v873, %v933
  %v937 = vmul.f32 %v874, %v933
  %v938 = vlaneseq
  %v939 = vshrl.u32 %v938, 7
  %v940 = vsub.s32 7, %v939
  %v941 = vrot.slane %v929, %v940
  %v942 = vadd.f32 %v934, %v941
  %v943 = vadd.f32 %v935, %v941
  %v944 = vadd.f32 %v936, %v941
  %v945 = vadd.f32 %v937, %v941
  %946 = vst [vmem:[%s4] sm:$0xff] %v942
  %947 = vst [vmem:[%s4 + $0x8] sm:$0xff] %v943
  %948 = vst [vmem:[%s4 + $0x10] sm:$0xff] %v944
  %949 = vst [vmem:[%s4 + $0x18] sm:$0xff] %v945
  // Predicated region
  $region18: #{residual_block.1} parent=0 // pred_check
    _
  $region19: #{residual_block.1} parent=0 // pred_check_branch
    %951 = sbr.rel (0) target = $region21
  $region20: #{residual_block.1} parent=0 // pred_region
    _
  $region21: #{residual_block.1} parent=0 // pred_fallthru
    _
  // Predicated region
  $region22: #{residual_block.1} parent=0 // pred_check
    _
  $region23: #{residual_block.1} parent=0 // pred_check_branch
    %953 = sbr.rel (0) target = $region25
  $region24: #{residual_block.1} parent=0 // pred_region
    _
  $region25: #{residual_block.1} parent=0 // pred_fallthru
    _

</llo_original>
